<compile_context>
chip_gen: v5e
topology: v5e:2x2
jax: 0.10.0
libtpu: 0.0.40
codegen_flags: <defaults>
</compile_context>

<pallas_src>
import functools

import jax
import jax.numpy as jnp
from jax import lax
from jax.experimental import pallas as pl
from jax.experimental.pallas import tpu as pltpu

NUM_CLASSES = 19
IGNORE_INDEX = 255
SMOOTH = 0.0
EPS = 1e-7
MAX_TILE = 32768   # spatial (lane) tile upper bound; multiple of 512
CHUNK = 512        # in-kernel chunk width (lanes); keeps temporaries in vregs


def _fold_to_128(x):
    """(C, w) -> (C, 128) lane-group sum via a pairwise tree (w = 128 * 2**k)."""
    while x.shape[1] > 128:
        h = x.shape[1] // 2
        x = x[:, :h] + x[:, h:]
    return x


def _partial_dice_kernel(pred_ref, tgt_ref, inter_ref, psum_ref, tsum_ref,
                         *, tile, chunk, hw, ns, num_classes, ignore_index):
    """Per-(batch, spatial-split, spatial-tile) partial class sums.

    pred_ref : (1, C, tile) logits (f32 or bf16; upcast on load)
    tgt_ref  : (1, 1, tile) int32 labels
    inter/psum/tsum_ref : (1, 1, C, 128) f32, resident across the innermost
      (spatial-tile) grid axis and used directly as accumulators:
        inter = sum(probs * onehot), psum = sum(probs * valid), tsum = sum(onehot)
    """
    p = pl.program_id(1)
    s = pl.program_id(2)

    @pl.when(s == 0)
    def _():
        inter_ref[...] = jnp.zeros_like(inter_ref)
        psum_ref[...] = jnp.zeros_like(psum_ref)
        tsum_ref[...] = jnp.zeros_like(tsum_ref)

    base = (p * ns + s) * tile       # global lane offset of this tile
    ragged = (hw % tile) != 0        # static: a padded tail exists somewhere

    def chunk_body(j, carry):
        inter_acc, psum_acc, tsum_acc = carry
        off = pl.multiple_of(j * chunk, 128)
        logits = pred_ref[0, :, pl.ds(off, chunk)].astype(jnp.float32)  # (C, chunk)
        tgt = tgt_ref[0, :, pl.ds(off, chunk)]                          # (1, chunk)

        valid = tgt != ignore_index                                     # (1, chunk)
        if ragged:
            lane = lax.broadcasted_iota(jnp.int32, (1, chunk), 1)
            valid = jnp.logical_and(valid, (base + off + lane) < hw)

        # Softmax over the class (sublane) axis. Garbage lanes in the padded
        # tail may yield NaN/inf probs; the selects below turn them into exact 0.
        m = jnp.max(logits, axis=0, keepdims=True)                      # (1, chunk)
        e = jnp.exp(logits - m)                                         # (C, chunk)
        denom = jnp.sum(e, axis=0, keepdims=True)                       # (1, chunk)
        r = pl.reciprocal(denom, approx=True)                           # EUP
        r = r * (2.0 - denom * r)                                       # 1 Newton step
        probs = e * r                                                   # (C, chunk)

        # One-hot via compare; invalid pixels get a non-existent class id so all
        # three contributions there are selected to exact zero (no mask-multiply).
        tgt_sel = jnp.where(valid, tgt, num_classes)                    # (1, chunk)
        cls = lax.broadcasted_iota(jnp.int32, (num_classes, chunk), 0)
        hit = cls == tgt_sel                                            # (C, chunk)

        inter_acc = inter_acc + _fold_to_128(jnp.where(hit, probs, 0.0))
        psum_acc = psum_acc + _fold_to_128(jnp.where(valid, probs, 0.0))
        tsum_acc = tsum_acc + _fold_to_128(hit.astype(jnp.float32))
        return inter_acc, psum_acc, tsum_acc

    n_chunks = tile // chunk
    zero = jnp.zeros((num_classes, 128), jnp.float32)
    inter_acc, psum_acc, tsum_acc = lax.fori_loop(
        0, n_chunks, chunk_body, (zero, zero, zero), unroll=min(4, n_chunks))

    inter_ref[...] += inter_acc[None, None]
    psum_ref[...] += psum_acc[None, None]
    tsum_ref[...] += tsum_acc[None, None]


def logcosh_dice_loss(pred, target, num_classes=NUM_CLASSES,
                      ignore_index=IGNORE_INDEX, max_tile=MAX_TILE):
    """pred: (N, C, H, W) float logits (f32 or bf16); target: (N, H, W) int labels."""
    N, C, H, W = pred.shape
    hw = H * W
    pred = pred.reshape(N, C, hw)                  # native dtype; upcast in-kernel
    target = target.reshape(N, 1, hw).astype(jnp.int32)

    tile = min(max_tile, pl.cdiv(hw, 128) * 128)   # lane-dense multiple of 128
    chunk = next(c for c in (CHUNK, 256, 128) if tile % c == 0)
    grid_s = pl.cdiv(hw, tile)

    # Split the spatial blocks over a second "parallel" grid axis when possible so
    # both TensorCores of a v7x chip get work even at N == 1.
    if grid_s % 2 == 0:
        n_split, ns = 2, grid_s // 2
    else:
        n_split, ns = 1, grid_s

    kernel = functools.partial(
        _partial_dice_kernel, tile=tile, chunk=chunk, hw=hw, ns=ns,
        num_classes=num_classes, ignore_index=ignore_index)

    part_shape = jax.ShapeDtypeStruct((N, n_split, C, 128), jnp.float32)
    part_spec = pl.BlockSpec((1, 1, C, 128), lambda b, p, s: (b, p, 0, 0))

    inter, psum, tsum = pl.pallas_call(
        kernel,
        out_shape=[part_shape, part_shape, part_shape],
        grid_spec=pltpu.PrefetchScalarGridSpec(
            num_scalar_prefetch=0,
            grid=(N, n_split, ns),
            in_specs=[
                pl.BlockSpec((1, C, tile), lambda b, p, s: (b, 0, p * ns + s)),
                pl.BlockSpec((1, 1, tile), lambda b, p, s: (b, 0, p * ns + s)),
            ],
            out_specs=[part_spec, part_spec, part_spec],
        ),
        compiler_params=pltpu.CompilerParams(
            dimension_semantics=("parallel", "parallel", "arbitrary"),
            vmem_limit_bytes=32 * 1024 * 1024),
    )(pred, target)

    # Tiny finalization in plain JAX (keeps the batch / split grid axes parallel).
    inter = jnp.sum(inter, axis=(0, 1, 3))                   # (C,)
    tsum = jnp.sum(tsum, axis=(0, 1, 3))                     # (C,)
    card = jnp.sum(psum, axis=(0, 1, 3)) + tsum              # (C,)
    dice = (2.0 * inter + SMOOTH) / jnp.maximum(card + SMOOTH, EPS)
    loss = (1.0 - dice) * (tsum > 0).astype(jnp.float32)     # zero absent classes
    x = jnp.sum(loss) / num_classes                          # mean over classes
    return jnp.log((jnp.exp(x) + jnp.exp(-x)) / 2.0)


def _ref_loss(pred, target, num_classes=NUM_CLASSES, ignore_index=IGNORE_INDEX):
    """Pure-JAX reference mirroring smp DiceLoss(multiclass) + log-cosh."""
    N, C, H, W = pred.shape
    probs = jax.nn.softmax(pred.astype(jnp.float32), axis=1).reshape(N, C, -1)
    t = target.reshape(N, -1)
    valid = (t != ignore_index)
    onehot = jax.nn.one_hot(jnp.where(valid, t, 0), num_classes, axis=-1)  # N,HW,C
    onehot = jnp.transpose(onehot, (0, 2, 1)) * valid[:, None, :]
    probs = probs * valid[:, None, :]
    dims = (0, 2)
    inter = jnp.sum(probs * onehot, axis=dims)
    card = jnp.sum(probs + onehot, axis=dims)
    dice = (2.0 * inter + SMOOTH) / jnp.maximum(card + SMOOTH, EPS)
    loss = (1.0 - dice) * (jnp.sum(onehot, axis=dims) > 0)
    x = jnp.mean(loss)
    return jnp.log((jnp.exp(x) + jnp.exp(-x)) / 2.0)


def _make_inputs(key, N, H, W):
    k1, k2, k3 = jax.random.split(key, 3)
    pred = jax.random.normal(k1, (N, NUM_CLASSES, H, W), dtype=jnp.float32)
    target = jax.random.randint(k2, (N, H, W), 0, NUM_CLASSES, dtype=jnp.int32)
    ignore_mask = jax.random.bernoulli(k3, 0.1, (N, H, W))
    target = jnp.where(ignore_mask, IGNORE_INDEX, target)
    return pred, target


if __name__ == "__main__":
    key = jax.random.PRNGKey(0)
    k_a, k_b = jax.random.split(key)

    # Canonical small case: single tile, single chunk, single spatial block.
    pred, target = _make_inputs(k_a, N=2, H=16, W=16)
    out = jax.block_until_ready(jax.jit(logcosh_dice_loss)(pred, target))
    ref = jax.block_until_ready(_ref_loss(pred, target))
    assert jnp.isfinite(out), "non-finite kernel output"
    assert jnp.allclose(out, ref, atol=1e-5, rtol=1e-5), (out, ref)

    # Exercise the multi-chunk inner loop (tile=1024, chunk=512) and, with a
    # reduced max_tile, the two-way parallel spatial split (grid=(N, 2, 1)).
    pred2, target2 = _make_inputs(k_b, N=2, H=32, W=32)
    ref2 = jax.block_until_ready(_ref_loss(pred2, target2))
    out2 = jax.block_until_ready(jax.jit(logcosh_dice_loss)(pred2, target2))
    assert jnp.allclose(out2, ref2, atol=1e-5, rtol=1e-5), (out2, ref2)
    out3 = jax.block_until_ready(
        jax.jit(functools.partial(logcosh_dice_loss, max_tile=512))(pred2, target2))
    assert jnp.allclose(out3, ref2, atol=1e-5, rtol=1e-5), (out3, ref2)

    print("KERNEL_OK")
</pallas_src>

<mosaic_0001>
module attributes {stable_mosaic.version = 11 : i64} {
  func.func @_partial_dice_kernel(%arg0: i32, %arg1: i32, %arg2: i32, %arg3: memref<1x19x256xf32, #tpu.memory_space<vmem>>, %arg4: memref<1x1x256xi32, #tpu.memory_space<vmem>>, %arg5: memref<1x1x19x128xf32, #tpu.memory_space<vmem>>, %arg6: memref<1x1x19x128xf32, #tpu.memory_space<vmem>>, %arg7: memref<1x1x19x128xf32, #tpu.memory_space<vmem>>) attributes {dimension_semantics = [#tpu.dimension_semantics<parallel>, #tpu.dimension_semantics<parallel>, #tpu.dimension_semantics<arbitrary>], iteration_bounds = array<i64: 2, 1, 1>, scalar_prefetch = 0 : i64, scratch_operands = 0 : i64, tpu.core_type = #tpu.core_type<tc>, window_params = [{transform_indices = @transform_0, window_bounds = array<i64: 1, 19, 256>}, {transform_indices = @transform_1, window_bounds = array<i64: 1, 1, 256>}, {transform_indices = @transform_2, window_bounds = array<i64: 1, 1, 19, 128>}, {transform_indices = @transform_3, window_bounds = array<i64: 1, 1, 19, 128>}, {transform_indices = @transform_4, window_bounds = array<i64: 1, 1, 19, 128>}]} {
    %c0_i32 = arith.constant 0 : i32
    %0 = arith.cmpi eq, %arg2, %c0_i32 : i32
    %1 = arith.extui %0 : i1 to i32
    %c0_i32_0 = arith.constant 0 : i32
    %2 = arith.cmpi ne, %1, %c0_i32_0 : i32
    scf.if %2 {
      %cst_34 = arith.constant 0.000000e+00 : f32
      %65 = vector.broadcast %cst_34 : f32 to vector<1x1x19x128xf32>
      %c0_35 = arith.constant 0 : index
      %c0_36 = arith.constant 0 : index
      %c0_37 = arith.constant 0 : index
      %c0_38 = arith.constant 0 : index
      %66 = vector.load %arg5[%c0_35, %c0_36, %c0_37, %c0_38] : memref<1x1x19x128xf32, #tpu.memory_space<vmem>>, vector<1x1x19x128xf32>
      tpu.vector_store %arg5[%c0_35, %c0_36, %c0_37, %c0_38], %65 {strides = array<i32>} : memref<1x1x19x128xf32, #tpu.memory_space<vmem>>, vector<1x1x19x128xf32>,
      %cst_39 = arith.constant 0.000000e+00 : f32
      %67 = vector.broadcast %cst_39 : f32 to vector<1x1x19x128xf32>
      %c0_40 = arith.constant 0 : index
      %c0_41 = arith.constant 0 : index
      %c0_42 = arith.constant 0 : index
      %c0_43 = arith.constant 0 : index
      %68 = vector.load %arg6[%c0_40, %c0_41, %c0_42, %c0_43] : memref<1x1x19x128xf32, #tpu.memory_space<vmem>>, vector<1x1x19x128xf32>
      tpu.vector_store %arg6[%c0_40, %c0_41, %c0_42, %c0_43], %67 {strides = array<i32>} : memref<1x1x19x128xf32, #tpu.memory_space<vmem>>, vector<1x1x19x128xf32>,
      %cst_44 = arith.constant 0.000000e+00 : f32
      %69 = vector.broadcast %cst_44 : f32 to vector<1x1x19x128xf32>
      %c0_45 = arith.constant 0 : index
      %c0_46 = arith.constant 0 : index
      %c0_47 = arith.constant 0 : index
      %c0_48 = arith.constant 0 : index
      %70 = vector.load %arg7[%c0_45, %c0_46, %c0_47, %c0_48] : memref<1x1x19x128xf32, #tpu.memory_space<vmem>>, vector<1x1x19x128xf32>
      tpu.vector_store %arg7[%c0_45, %c0_46, %c0_47, %c0_48], %69 {strides = array<i32>} : memref<1x1x19x128xf32, #tpu.memory_space<vmem>>, vector<1x1x19x128xf32>,
    } else {
    }
    %cst = arith.constant 0.000000e+00 : f32
    %3 = vector.broadcast %cst : f32 to vector<19x128xf32>
    %c0_i32_1 = arith.constant 0 : i32
    %c256_i32 = arith.constant 256 : i32
    %4 = arith.muli %c0_i32_1, %c256_i32 : i32
    %5 = tpu.assume_multiple %4, 128 : i32
    %c0 = arith.constant 0 : index
    %c0_2 = arith.constant 0 : index
    %6 = arith.index_cast %5 : i32 to index
    %7 = vector.load %arg3[%c0, %c0_2, %6] : memref<1x19x256xf32, #tpu.memory_space<vmem>>, vector<1x19x256xf32>
    %8 = vector.shape_cast %7 : vector<1x19x256xf32> to vector<19x256xf32>
    %c0_3 = arith.constant 0 : index
    %c0_4 = arith.constant 0 : index
    %9 = arith.index_cast %5 : i32 to index
    %10 = vector.load %arg4[%c0_3, %c0_4, %9] : memref<1x1x256xi32, #tpu.memory_space<vmem>>, vector<1x1x256xi32>
    %11 = vector.shape_cast %10 : vector<1x1x256xi32> to vector<1x256xi32>
    %c255_i32 = arith.constant 255 : i32
    %12 = vector.broadcast %c255_i32 : i32 to vector<1x256xi32>
    %13 = arith.cmpi ne, %11, %12 : vector<1x256xi32>
    %cst_5 = arith.constant dense<0xFF800000> : vector<256xf32>
    %14 = vector.multi_reduction <maximumf>, %8, %cst_5 [0] : vector<19x256xf32> to vector<256xf32>
    %15 = vector.shape_cast %14 : vector<256xf32> to vector<1x256xf32>
    %16 = vector.broadcast %15 : vector<1x256xf32> to vector<19x256xf32>
    %17 = arith.subf %8, %16 : vector<19x256xf32>
    %18 = math.exp %17 : vector<19x256xf32>
    %cst_6 = arith.constant dense<0.000000e+00> : vector<256xf32>
    %19 = vector.multi_reduction <add>, %18, %cst_6 [0] : vector<19x256xf32> to vector<256xf32>
    %20 = vector.shape_cast %19 : vector<256xf32> to vector<1x256xf32>
    %21 = tpu.reciprocal %20 {approx = true} : vector<1x256xf32> -> vector<1x256xf32>
    %22 = arith.mulf %20, %21 : vector<1x256xf32>
    %cst_7 = arith.constant 2.000000e+00 : f32
    %23 = vector.broadcast %cst_7 : f32 to vector<1x256xf32>
    %24 = arith.subf %23, %22 : vector<1x256xf32>
    %25 = arith.mulf %21, %24 : vector<1x256xf32>
    %26 = vector.broadcast %25 : vector<1x256xf32> to vector<19x256xf32>
    %27 = arith.mulf %18, %26 : vector<19x256xf32>
    %c19_i32 = arith.constant 19 : i32
    %28 = vector.broadcast %c19_i32 : i32 to vector<1x256xi32>
    %29 = arith.select %13, %11, %28 : vector<1x256xi1>, vector<1x256xi32>
    %30 = tpu.iota {dimensions = array<i32: 0>} : vector<19x256xi32>
    %31 = vector.broadcast %29 : vector<1x256xi32> to vector<19x256xi32>
    %32 = arith.cmpi eq, %30, %31 : vector<19x256xi32>
    %cst_8 = arith.constant 0.000000e+00 : f32
    %33 = vector.broadcast %cst_8 : f32 to vector<19x256xf32>
    %34 = arith.select %32, %27, %33 : vector<19x256xi1>, vector<19x256xf32>
    %35 = vector.extract_strided_slice %34 {offsets = [0, 0], sizes = [19, 128], strides = [1, 1]} : vector<19x256xf32> to vector<19x128xf32>
    %36 = vector.extract_strided_slice %34 {offsets = [0, 128], sizes = [19, 128], strides = [1, 1]} : vector<19x256xf32> to vector<19x128xf32>
    %37 = arith.addf %35, %36 : vector<19x128xf32>
    %38 = arith.addf %3, %37 : vector<19x128xf32>
    %cst_9 = arith.constant 0.000000e+00 : f32
    %39 = vector.shape_cast %13 : vector<1x256xi1> to vector<1x256xi1>
    %40 = vector.broadcast %39 : vector<1x256xi1> to vector<19x256xi1>
    %41 = vector.broadcast %cst_9 : f32 to vector<19x256xf32>
    %42 = arith.select %40, %27, %41 : vector<19x256xi1>, vector<19x256xf32>
    %43 = vector.extract_strided_slice %42 {offsets = [0, 0], sizes = [19, 128], strides = [1, 1]} : vector<19x256xf32> to vector<19x128xf32>
    %44 = vector.extract_strided_slice %42 {offsets = [0, 128], sizes = [19, 128], strides = [1, 1]} : vector<19x256xf32> to vector<19x128xf32>
    %45 = arith.addf %43, %44 : vector<19x128xf32>
    %46 = arith.addf %3, %45 : vector<19x128xf32>
    %47 = arith.extui %32 : vector<19x256xi1> to vector<19x256xi32>
    %48 = arith.sitofp %47 : vector<19x256xi32> to vector<19x256xf32>
    %49 = vector.extract_strided_slice %48 {offsets = [0, 0], sizes = [19, 128], strides = [1, 1]} : vector<19x256xf32> to vector<19x128xf32>
    %50 = vector.extract_strided_slice %48 {offsets = [0, 128], sizes = [19, 128], strides = [1, 1]} : vector<19x256xf32> to vector<19x128xf32>
    %51 = arith.addf %49, %50 : vector<19x128xf32>
    %52 = arith.addf %3, %51 : vector<19x128xf32>
    %c1_i32 = arith.constant 1 : i32
    %c0_10 = arith.constant 0 : index
    %c0_11 = arith.constant 0 : index
    %c0_12 = arith.constant 0 : index
    %c0_13 = arith.constant 0 : index
    %53 = vector.load %arg5[%c0_10, %c0_11, %c0_12, %c0_13] : memref<1x1x19x128xf32, #tpu.memory_space<vmem>>, vector<1x1x19x128xf32>
    %54 = vector.shape_cast %38 : vector<19x128xf32> to vector<1x1x19x128xf32>
    %55 = arith.addf %53, %54 : vector<1x1x19x128xf32>
    %c0_14 = arith.constant 0 : index
    %c0_15 = arith.constant 0 : index
    %c0_16 = arith.constant 0 : index
    %c0_17 = arith.constant 0 : index
    %56 = vector.load %arg5[%c0_14, %c0_15, %c0_16, %c0_17] : memref<1x1x19x128xf32, #tpu.memory_space<vmem>>, vector<1x1x19x128xf32>
    tpu.vector_store %arg5[%c0_14, %c0_15, %c0_16, %c0_17], %55 {strides = array<i32>} : memref<1x1x19x128xf32, #tpu.memory_space<vmem>>, vector<1x1x19x128xf32>,
    %c0_18 = arith.constant 0 : index
    %c0_19 = arith.constant 0 : index
    %c0_20 = arith.constant 0 : index
    %c0_21 = arith.constant 0 : index
    %57 = vector.load %arg6[%c0_18, %c0_19, %c0_20, %c0_21] : memref<1x1x19x128xf32, #tpu.memory_space<vmem>>, vector<1x1x19x128xf32>
    %58 = vector.shape_cast %46 : vector<19x128xf32> to vector<1x1x19x128xf32>
    %59 = arith.addf %57, %58 : vector<1x1x19x128xf32>
    %c0_22 = arith.constant 0 : index
    %c0_23 = arith.constant 0 : index
    %c0_24 = arith.constant 0 : index
    %c0_25 = arith.constant 0 : index
    %60 = vector.load %arg6[%c0_22, %c0_23, %c0_24, %c0_25] : memref<1x1x19x128xf32, #tpu.memory_space<vmem>>, vector<1x1x19x128xf32>
    tpu.vector_store %arg6[%c0_22, %c0_23, %c0_24, %c0_25], %59 {strides = array<i32>} : memref<1x1x19x128xf32, #tpu.memory_space<vmem>>, vector<1x1x19x128xf32>,
    %c0_26 = arith.constant 0 : index
    %c0_27 = arith.constant 0 : index
    %c0_28 = arith.constant 0 : index
    %c0_29 = arith.constant 0 : index
    %61 = vector.load %arg7[%c0_26, %c0_27, %c0_28, %c0_29] : memref<1x1x19x128xf32, #tpu.memory_space<vmem>>, vector<1x1x19x128xf32>
    %62 = vector.shape_cast %52 : vector<19x128xf32> to vector<1x1x19x128xf32>
    %63 = arith.addf %61, %62 : vector<1x1x19x128xf32>
    %c0_30 = arith.constant 0 : index
    %c0_31 = arith.constant 0 : index
    %c0_32 = arith.constant 0 : index
    %c0_33 = arith.constant 0 : index
    %64 = vector.load %arg7[%c0_30, %c0_31, %c0_32, %c0_33] : memref<1x1x19x128xf32, #tpu.memory_space<vmem>>, vector<1x1x19x128xf32>
    tpu.vector_store %arg7[%c0_30, %c0_31, %c0_32, %c0_33], %63 {strides = array<i32>} : memref<1x1x19x128xf32, #tpu.memory_space<vmem>>, vector<1x1x19x128xf32>,
    return
  }
  func.func @transform_0(%arg0: i32, %arg1: i32, %arg2: i32) -> (i32, i32, i32) {
    %c1_i32 = arith.constant 1 : i32
    %0 = arith.muli %arg1, %c1_i32 : i32
    %1 = arith.addi %0, %arg2 : i32
    %c0_i32 = arith.constant 0 : i32
    %c0_i32_0 = arith.constant 0 : i32
    return %arg0, %c0_i32, %1 : i32, i32, i32
  }
  func.func @transform_1(%arg0: i32, %arg1: i32, %arg2: i32) -> (i32, i32, i32) {
    %c1_i32 = arith.constant 1 : i32
    %0 = arith.muli %arg1, %c1_i32 : i32
    %1 = arith.addi %0, %arg2 : i32
    %c0_i32 = arith.constant 0 : i32
    %c0_i32_0 = arith.constant 0 : i32
    return %arg0, %c0_i32, %1 : i32, i32, i32
  }
  func.func @transform_2(%arg0: i32, %arg1: i32, %arg2: i32) -> (i32, i32, i32, i32) {
    %c0_i32 = arith.constant 0 : i32
    %c0_i32_0 = arith.constant 0 : i32
    %c0_i32_1 = arith.constant 0 : i32
    return %arg0, %arg1, %c0_i32, %c0_i32_0 : i32, i32, i32, i32
  }
  func.func @transform_3(%arg0: i32, %arg1: i32, %arg2: i32) -> (i32, i32, i32, i32) {
    %c0_i32 = arith.constant 0 : i32
    %c0_i32_0 = arith.constant 0 : i32
    %c0_i32_1 = arith.constant 0 : i32
    return %arg0, %arg1, %c0_i32, %c0_i32_0 : i32, i32, i32, i32
  }
  func.func @transform_4(%arg0: i32, %arg1: i32, %arg2: i32) -> (i32, i32, i32, i32) {
    %c0_i32 = arith.constant 0 : i32
    %c0_i32_0 = arith.constant 0 : i32
    %c0_i32_1 = arith.constant 0 : i32
    return %arg0, %arg1, %c0_i32, %c0_i32_0 : i32, i32, i32, i32
  }
}

</mosaic_0001>

<llo_original>
// kernel: logcosh_dice_loss.1
$region0: #{logcosh_dice_loss.1}
  #allocation0 [shape = 'u32[]', space=smem, size = 0x4, offset = 0x4, fixed_abs, tag = 'smem constant byte address 0x4 - core index']
  #allocation1 [shape = 'u32[72,128]{1,0:T(1,128)}', space=vmem, size = 0x9000, scoped, tag = 'internal scratch']
  %s0 = inlined_call_operand.vmem [shape: f32[2,19,256], index: 0, kind: input, shape index: {}]
  %s1 = inlined_call_operand.vmem [shape: s32[2,1,256], index: 1, kind: input, shape index: {}]
  %s2 = inlined_call_operand.vmem [shape: f32[2,1,19,128], index: 2, kind: output, shape index: {0}]
  %s3 = inlined_call_operand.vmem [shape: f32[2,1,19,128], index: 3, kind: output, shape index: {1}]
  %s4 = inlined_call_operand.vmem [shape: f32[2,1,19,128], index: 4, kind: output, shape index: {2}]
  %5 = xla_tuple %s2, %s3, %s4
  %s6 = sld [smem:[#allocation0]]
  $region61: #{logcosh_dice_loss.1} parent=0
    _
  %s8 = ssub.s32 1, %s6
  %s9 = scalar_select 0, %s8, %s6
  loop: start=0, step=1, limit=4
  $region2: #{logcosh_dice_loss.1} parent=0 // loop_pre_header
    _
  $region3: #{logcosh_dice_loss.1} parent=0 // loop_header
    %s11 = sphi 0, %s15
    %p12 = scmp.ge.s32.totalorder %s11, 4
    %s18 = sphi 0, %s37
    %s19 = sphi 0, %s33
    %s20 = sphi 0, %s29
    %s21 = sphi 0, %s18
    %s22 = sphi 0, %s19
    %s23 = sphi 0, %s20
    %s24 = sphi 0, %s21
    %s25 = sphi 0, %s22
    %s26 = sphi 0, %s23
    %s44 = sphi 0, %s46
    %s47 = sphi 0, %s44
    %s48 = sphi 0, %s47
    %s64 = sphi 0, %s48
    %s74 = sphi 0, %s76
    %s77 = sphi 0, %s74
    %s78 = sphi 0, %s77
    %s94 = sphi 0, %s78
    %s102 = sphi 0, %s104
    %s105 = sphi 0, %s102
    %s106 = sphi 0, %s105
    %s122 = sphi 0, %s106
    %s130 = sphi 0, %s132
    %s133 = sphi 0, %s130
    %s134 = sphi 0, %s133
    %s150 = sphi 0, %s134
    %s158 = sphi 0, %s160
    %s161 = sphi 0, %s158
    %s162 = sphi 0, %s161
    %s178 = sphi 0, %s162
  $region4: #{logcosh_dice_loss.1} parent=0 // loop_header_branch
    %14 = sbr.rel (%p12) target = $region8
  $region5: #{logcosh_dice_loss.1} parent=0 // loop_body
    %s16 = ssub.s32 %s11, 1
    %s17 = ssub.s32 %s11, 2
    %s27 = sadd.s32 1, %s20
    %p28 = scmp.ge.s32.totalorder %s27, 1
    %s29 = scalar_select %p28, 0, %s27
    %s30 = sadd.s32 1, %s19
    %s31 = scalar_select %p28, %s30, %s19
    %p32 = scmp.ge.s32.totalorder %s31, 1
    %s33 = scalar_select %p32, 0, %s31
    %s34 = sadd.s32 1, %s18
    %s35 = scalar_select %p32, %s34, %s18
    %p36 = scmp.ge.s32.totalorder %s35, 2
    %s37 = scalar_select %p36, 0, %s35
    %s38 = sadd.s32 %s19, %s20
    %s39 = sadd.s32 %s33, %s29
    %s40 = ssub.s32 %s18, %s37
    %s41 = ssub.s32 %s38, %s39
    %s42 = sor.u32 %s40, %s41
    %p43 = scmp.eq.s32.totalorder %s42, 0
    %s45 = sadd.s32 %s44, 1
    %s46 = scalar_select %p43, %s44, %s45
    %p49 = pneg %p43
    %p50 = scmp.eq.s32.totalorder %s11, 1
    %p51 = por %p49, %p50
    %p52 = scmp.ne.s32.totalorder %s44, %s47
    %p53 = scmp.eq.s32.totalorder %s11, 0
    %p54 = por %p52, %p53
    %p55 = scmp.ne.s32.totalorder %s44, %s47
    %p56 = scmp.eq.s32.totalorder %s16, 1
    %p57 = por %p55, %p56
    %p58 = scmp.ne.s32.totalorder %s47, %s48
    %p59 = scmp.eq.s32.totalorder %s16, 0
    %p60 = por %p58, %p59
    %p61 = scmp.ne.s32.totalorder %s47, %s48
    %p62 = scmp.eq.s32.totalorder %s17, 1
    %p63 = por %p61, %p62
    %p65 = scmp.ne.s32.totalorder %s48, %s64
    %p66 = scmp.eq.s32.totalorder %s17, 0
    %p67 = por %p65, %p66
    %s68 = sadd.s32 %s19, %s20
    %s69 = sadd.s32 %s33, %s29
    %s70 = ssub.s32 %s18, %s37
    %s71 = ssub.s32 %s68, %s69
    %s72 = sor.u32 %s70, %s71
    %p73 = scmp.eq.s32.totalorder %s72, 0
    %s75 = sadd.s32 %s74, 1
    %s76 = scalar_select %p73, %s74, %s75
    %p79 = pneg %p73
    %p80 = scmp.eq.s32.totalorder %s11, 1
    %p81 = por %p79, %p80
    %p82 = scmp.ne.s32.totalorder %s74, %s77
    %p83 = scmp.eq.s32.totalorder %s11, 0
    %p84 = por %p82, %p83
    %p85 = scmp.ne.s32.totalorder %s74, %s77
    %p86 = scmp.eq.s32.totalorder %s16, 1
    %p87 = por %p85, %p86
    %p88 = scmp.ne.s32.totalorder %s77, %s78
    %p89 = scmp.eq.s32.totalorder %s16, 0
    %p90 = por %p88, %p89
    %p91 = scmp.ne.s32.totalorder %s77, %s78
    %p92 = scmp.eq.s32.totalorder %s17, 1
    %p93 = por %p91, %p92
    %p95 = scmp.ne.s32.totalorder %s78, %s94
    %p96 = scmp.eq.s32.totalorder %s17, 0
    %p97 = por %p95, %p96
    %s98 = ssub.s32 %s18, %s37
    %s99 = ssub.s32 %s19, %s33
    %s100 = sor.u32 %s98, %s99
    %p101 = scmp.eq.s32.totalorder %s100, 0
    %s103 = sadd.s32 %s102, 1
    %s104 = scalar_select %p101, %s102, %s103
    %p107 = pneg %p101
    %p108 = scmp.eq.s32.totalorder %s11, 1
    %p109 = por %p107, %p108
    %p110 = scmp.ne.s32.totalorder %s102, %s105
    %p111 = scmp.eq.s32.totalorder %s11, 0
    %p112 = por %p110, %p111
    %p113 = scmp.ne.s32.totalorder %s102, %s105
    %p114 = scmp.eq.s32.totalorder %s16, 1
    %p115 = por %p113, %p114
    %p116 = scmp.ne.s32.totalorder %s105, %s106
    %p117 = scmp.eq.s32.totalorder %s16, 0
    %p118 = por %p116, %p117
    %p119 = scmp.ne.s32.totalorder %s105, %s106
    %p120 = scmp.eq.s32.totalorder %s17, 1
    %p121 = por %p119, %p120
    %p123 = scmp.ne.s32.totalorder %s106, %s122
    %p124 = scmp.eq.s32.totalorder %s17, 0
    %p125 = por %p123, %p124
    %s126 = ssub.s32 %s18, %s37
    %s127 = ssub.s32 %s19, %s33
    %s128 = sor.u32 %s126, %s127
    %p129 = scmp.eq.s32.totalorder %s128, 0
    %s131 = sadd.s32 %s130, 1
    %s132 = scalar_select %p129, %s130, %s131
    %p135 = pneg %p129
    %p136 = scmp.eq.s32.totalorder %s11, 1
    %p137 = por %p135, %p136
    %p138 = scmp.ne.s32.totalorder %s130, %s133
    %p139 = scmp.eq.s32.totalorder %s11, 0
    %p140 = por %p138, %p139
    %p141 = scmp.ne.s32.totalorder %s130, %s133
    %p142 = scmp.eq.s32.totalorder %s16, 1
    %p143 = por %p141, %p142
    %p144 = scmp.ne.s32.totalorder %s133, %s134
    %p145 = scmp.eq.s32.totalorder %s16, 0
    %p146 = por %p144, %p145
    %p147 = scmp.ne.s32.totalorder %s133, %s134
    %p148 = scmp.eq.s32.totalorder %s17, 1
    %p149 = por %p147, %p148
    %p151 = scmp.ne.s32.totalorder %s134, %s150
    %p152 = scmp.eq.s32.totalorder %s17, 0
    %p153 = por %p151, %p152
    %s154 = ssub.s32 %s18, %s37
    %s155 = ssub.s32 %s19, %s33
    %s156 = sor.u32 %s154, %s155
    %p157 = scmp.eq.s32.totalorder %s156, 0
    %s159 = sadd.s32 %s158, 1
    %s160 = scalar_select %p157, %s158, %s159
    %p163 = pneg %p157
    %p164 = scmp.eq.s32.totalorder %s11, 1
    %p165 = por %p163, %p164
    %p166 = scmp.ne.s32.totalorder %s158, %s161
    %p167 = scmp.eq.s32.totalorder %s11, 0
    %p168 = por %p166, %p167
    %p169 = scmp.ne.s32.totalorder %s158, %s161
    %p170 = scmp.eq.s32.totalorder %s16, 1
    %p171 = por %p169, %p170
    %p172 = scmp.ne.s32.totalorder %s161, %s162
    %p173 = scmp.eq.s32.totalorder %s16, 0
    %p174 = por %p172, %p173
    %p175 = scmp.ne.s32.totalorder %s161, %s162
    %p176 = scmp.eq.s32.totalorder %s17, 1
    %p177 = por %p175, %p176
    %p179 = scmp.ne.s32.totalorder %s162, %s178
    %p180 = scmp.eq.s32.totalorder %s17, 0
    %p181 = por %p179, %p180
    %p182 = scmp.le.s32.totalorder 1, %s11
    %p183 = scmp.lt.s32.totalorder %s11, 3
    %p184 = pnand %p182, %p183
    %p185 = pneg %p184
    // Predicated region
    $region9: #{logcosh_dice_loss.1} parent=5 // pred_check
      _
    $region10: #{logcosh_dice_loss.1} parent=5 // pred_check_branch
      %187 = sbr.rel (%p184) target = $region12
    $region11: #{logcosh_dice_loss.1} parent=5 // pred_region
      %s188 = ssub.s32 %s11, 1
    $region12: #{logcosh_dice_loss.1} parent=5 // pred_fallthru
      _
    %p189 = scmp.lt.s32.totalorder %s11, 2
    // Predicated region
    $region13: #{logcosh_dice_loss.1} parent=5 // pred_check
      %p190 = pneg %p189
    $region14: #{logcosh_dice_loss.1} parent=5 // pred_check_branch
      %192 = sbr.rel (%p190) target = $region16
    $region15: #{logcosh_dice_loss.1} parent=5 // pred_region
      // Predicated region
      $region17: #{logcosh_dice_loss.1} parent=15 // pred_check
        %p193 = pneg %p54
      $region18: #{logcosh_dice_loss.1} parent=15 // pred_check_branch
        %195 = sbr.rel (%p193) target = $region20
      $region19: #{logcosh_dice_loss.1} parent=15 // pred_region
        %s196 = sadd.s32 %s19, %s20
        %s197 = smul.u32 2, %s196
        %p198 = scmp.lt.s32.totalorder %s18, 1
        %s199 = scalar_select %p198, %s18, 1
        %p200 = scmp.lt.s32.totalorder %s197, 1
        %s201 = scalar_select %p200, %s197, 1
        %s202 = smul.addr %s199, 6
        %s203 = sadd.s32 %s201, %s202
        %s204 = smul.addr %s203, 8
        %s205 = scalar_lea.vmem %s0, %s204
        %s206 = sadd.s32 %s19, %s20
        %s207 = smul.u32 2, %s206
      $region20: #{logcosh_dice_loss.1} parent=15 // pred_fallthru
        _
      // Predicated region
      $region21: #{logcosh_dice_loss.1} parent=15 // pred_check
        %p208 = pneg %p84
      $region22: #{logcosh_dice_loss.1} parent=15 // pred_check_branch
        %210 = sbr.rel (%p208) target = $region24
      $region23: #{logcosh_dice_loss.1} parent=15 // pred_region
        %s211 = sadd.s32 %s19, %s20
        %s212 = smul.u32 2, %s211
        %p213 = scmp.lt.s32.totalorder %s18, 1
        %s214 = scalar_select %p213, %s18, 1
        %p215 = scmp.lt.s32.totalorder %s212, 1
        %s216 = scalar_select %p215, %s212, 1
        %s217 = smul.addr %s214, 2
        %s218 = sadd.s32 %s216, %s217
        %s219 = scalar_lea.vmem %s1, %s218
        %s220 = sadd.s32 %s19, %s20
        %s221 = smul.u32 2, %s220
      $region24: #{logcosh_dice_loss.1} parent=15 // pred_fallthru
        _
    $region16: #{logcosh_dice_loss.1} parent=5 // pred_fallthru
      _
    %p222 = scmp.le.s32.totalorder 1, %s11
    %p223 = scmp.lt.s32.totalorder %s11, 3
    %p224 = pnand %p222, %p223
    %p225 = pneg %p224
    // Predicated region
    $region25: #{logcosh_dice_loss.1} parent=5 // pred_check
      _
    $region26: #{logcosh_dice_loss.1} parent=5 // pred_check_branch
      %227 = sbr.rel (%p224) target = $region28
    $region27: #{logcosh_dice_loss.1} parent=5 // pred_region
      %s228 = ssub.s32 %s11, 1
      %s229 = sadd.s32 %s22, %s23
      %s230 = smul.u32 2, %s229
      %p231 = scmp.lt.s32.totalorder %s21, 1
      %s232 = scalar_select %p231, %s21, 1
      %p233 = scmp.lt.s32.totalorder %s230, 1
      %s234 = scalar_select %p233, %s230, 1
      %s235 = smul.addr %s232, 6
      %s236 = sadd.s32 %s234, %s235
      %s237 = smul.addr %s236, 8
      %s238 = scalar_lea.vmem %s0, %s237
      %p239 = pneg %p60
      %p240 = pneg %p57
      %s241 = sadd.s32 %s22, %s23
      %s242 = smul.u32 2, %s241
      %p243 = scmp.lt.s32.totalorder %s21, 1
      %s244 = scalar_select %p243, %s21, 1
      %p245 = scmp.lt.s32.totalorder %s242, 1
      %s246 = scalar_select %p245, %s242, 1
      %s247 = smul.addr %s244, 2
      %s248 = sadd.s32 %s246, %s247
      %s249 = scalar_lea.vmem %s1, %s248
      %p250 = pneg %p90
      %p251 = pneg %p87
      %p252 = pneg %p118
      %p253 = pneg %p115
      %p254 = scmp.lt.s32.totalorder %s21, 1
      %s255 = scalar_select %p254, %s21, 1
      %p256 = scmp.lt.s32.totalorder %s22, 0
      %s257 = scalar_select %p256, %s22, 0
      %s258 = smul.addr %s257, 3
      %s259 = smul.addr %s255, 3
      %s260 = sadd.s32 %s258, %s259
      %s261 = smul.addr %s260, 8
      %s262 = scalar_lea.vmem %s2, %s261
      %p263 = pneg %p146
      %p264 = pneg %p143
      %p265 = scmp.lt.s32.totalorder %s21, 1
      %s266 = scalar_select %p265, %s21, 1
      %p267 = scmp.lt.s32.totalorder %s22, 0
      %s268 = scalar_select %p267, %s22, 0
      %s269 = smul.addr %s268, 3
      %s270 = smul.addr %s266, 3
      %s271 = sadd.s32 %s269, %s270
      %s272 = smul.addr %s271, 8
      %s273 = scalar_lea.vmem %s3, %s272
      %p274 = pneg %p174
      %p275 = pneg %p171
      %p276 = scmp.lt.s32.totalorder %s21, 1
      %s277 = scalar_select %p276, %s21, 1
      %p278 = scmp.lt.s32.totalorder %s22, 0
      %s279 = scalar_select %p278, %s22, 0
      %s280 = smul.addr %s279, 3
      %s281 = smul.addr %s277, 3
      %s282 = sadd.s32 %s280, %s281
      %s283 = smul.addr %s282, 8
      %s284 = scalar_lea.vmem %s4, %s283
      %s285 = sadd.s32 %s22, %s23
      %s286 = smul.u32 2, %s285
      %p287 = scmp.lt.s32.totalorder %s21, 1
      %s288 = scalar_select %p287, %s21, 1
      %p289 = scmp.lt.s32.totalorder %s286, 1
      %s290 = scalar_select %p289, %s286, 1
      %s291 = smul.addr %s288, 6
      %s292 = sadd.s32 %s290, %s291
      %s293 = smul.addr %s292, 8
      %s294 = scalar_lea.vmem %s0, %s293
      %s295 = sadd.s32 %s22, %s23
      %s296 = smul.u32 2, %s295
      %s297 = sadd.s32 %s22, %s23
      %s298 = smul.u32 2, %s297
      %p299 = scmp.lt.s32.totalorder %s21, 1
      %s300 = scalar_select %p299, %s21, 1
      %p301 = scmp.lt.s32.totalorder %s298, 1
      %s302 = scalar_select %p301, %s298, 1
      %s303 = smul.addr %s300, 2
      %s304 = sadd.s32 %s302, %s303
      %s305 = scalar_lea.vmem %s1, %s304
      %s306 = sadd.s32 %s22, %s23
      %s307 = smul.u32 2, %s306
      %p308 = scmp.lt.s32.totalorder %s21, 1
      %s309 = scalar_select %p308, %s21, 1
      %p310 = scmp.lt.s32.totalorder %s22, 0
      %s311 = scalar_select %p310, %s22, 0
      %s312 = smul.addr %s311, 3
      %s313 = smul.addr %s309, 3
      %s314 = sadd.s32 %s312, %s313
      %s315 = smul.addr %s314, 8
      %s316 = scalar_lea.vmem %s2, %s315
      %p317 = scmp.lt.s32.totalorder %s21, 1
      %s318 = scalar_select %p317, %s21, 1
      %p319 = scmp.lt.s32.totalorder %s22, 0
      %s320 = scalar_select %p319, %s22, 0
      %s321 = smul.addr %s320, 3
      %s322 = smul.addr %s318, 3
      %s323 = sadd.s32 %s321, %s322
      %s324 = smul.addr %s323, 8
      %s325 = scalar_lea.vmem %s3, %s324
      %p326 = scmp.lt.s32.totalorder %s21, 1
      %s327 = scalar_select %p326, %s21, 1
      %p328 = scmp.lt.s32.totalorder %s22, 0
      %s329 = scalar_select %p328, %s22, 0
      %s330 = smul.addr %s329, 3
      %s331 = smul.addr %s327, 3
      %s332 = sadd.s32 %s330, %s331
      %s333 = smul.addr %s332, 8
      %s334 = scalar_lea.vmem %s4, %s333
      %p335 = scmp.eq.s32.totalorder %s23, 0
      // Predicated region
      $region29: #{logcosh_dice_loss.1} parent=27 // pred_check
        %p336 = pneg %p335
      $region30: #{logcosh_dice_loss.1} parent=27 // pred_check_branch
        %338 = sbr.rel (%p336) target = $region32
      $region31: #{logcosh_dice_loss.1} parent=27 // pred_region
        %339 = vst [vmem:[%s316] sm:$0xff] 0.0
        %340 = vst [vmem:[%s316 + $0x8] sm:$0xff] 0.0
        %341 = vst [vmem:[%s316 + $0x10] sm:$0x7] 0.0
        %342 = vst [vmem:[%s325] sm:$0xff] 0.0
        %343 = vst [vmem:[%s325 + $0x8] sm:$0xff] 0.0
        %344 = vst [vmem:[%s325 + $0x10] sm:$0x7] 0.0
        %345 = vst [vmem:[%s334] sm:$0xff] 0.0
        %346 = vst [vmem:[%s334 + $0x8] sm:$0xff] 0.0
        %347 = vst [vmem:[%s334 + $0x10] sm:$0x7] 0.0
      $region32: #{logcosh_dice_loss.1} parent=27 // pred_fallthru
        _
      %v348 = vld [vmem:[%s294] sm:$0xff]
      %v349 = vld [vmem:[%s294 + $0x8] sm:$0xff]
      %v350 = vld [vmem:[%s294 + $0x10] sm:$0xff]
      %v351 = vld [vmem:[%s294 + $0x18] sm:$0xff]
      %v352 = vld [vmem:[%s294 + $0x20] sm:$0x7]
      %v353 = vld [vmem:[%s294 + $0x28] sm:$0x7]
      %v354 = vld [vmem:[%s305] sm:$0x3]
      %vm355 = vcmp.ne.s32.totalorder %v354, 255
      %vm356 = vcmask 1042432
      %v357 = vsel %vm356, %v352, -inf
      %v358 = vmax.f32 %v348, %v357
      %v359 = vmax.f32 %v358, %v350
      %v360 = vrot.slane %v359, 4
      %v361 = vmax.f32 %v359, %v360
      %v362 = vrot.slane %v361, 2
      %v363 = vmax.f32 %v361, %v362
      %v364 = vrot.slane %v363, 1
      %v365 = vmax.f32 %v363, %v364
      %v366 = vsel %vm356, %v353, -inf
      %v367 = vmax.f32 %v349, %v366
      %v368 = vmax.f32 %v367, %v351
      %v369 = vrot.slane %v368, 4
      %v370 = vmax.f32 %v368, %v369
      %v371 = vrot.slane %v370, 2
      %v372 = vmax.f32 %v370, %v371
      %v373 = vrot.slane %v372, 1
      %v374 = vmax.f32 %v372, %v373
      %v375 = vsub.f32 %v348, %v365
      %v376 = vsub.f32 %v349, %v374
      %v377 = vsub.f32 %v350, %v365
      %v378 = vsub.f32 %v351, %v374
      %v379 = vsub.f32 %v352, %v365
      %v380 = vsub.f32 %v353, %v374
      %v381 = vmul.f32 %v375, 1.442695
      %v382 = vpow.pop %v381
      %v383 = vmul.f32 %v376, 1.442695
      %v384 = vpow.pop %v383
      %v385 = vmul.f32 %v377, 1.442695
      %v386 = vpow.pop %v385
      %v387 = vmul.f32 %v378, 1.442695
      %v388 = vpow.pop %v387
      %v389 = vmul.f32 %v379, 1.442695
      %v390 = vpow.pop %v389
      %v391 = vmul.f32 %v380, 1.442695
      %v392 = vpow.pop %v391
      %v393 = vadd.f32 %v382, %v386
      %v394 = vsel %vm356, %v390, 0.0
      %v395 = vadd.f32 %v393, %v394
      %v396 = vrot.slane %v395, 4
      %v397 = vadd.f32 %v395, %v396
      %v398 = vrot.slane %v397, 2
      %v399 = vadd.f32 %v397, %v398
      %v400 = vrot.slane %v399, 1
      %v401 = vadd.f32 %v399, %v400
      %v402 = vadd.f32 %v384, %v388
      %v403 = vsel %vm356, %v392, 0.0
      %v404 = vadd.f32 %v402, %v403
      %v405 = vrot.slane %v404, 4
      %v406 = vadd.f32 %v404, %v405
      %v407 = vrot.slane %v406, 2
      %v408 = vadd.f32 %v406, %v407
      %v409 = vrot.slane %v408, 1
      %v410 = vadd.f32 %v408, %v409
      %v411 = vrcp.pop %v401
      %v412 = vrcp.pop %v410
      %v413 = vmul.f32 %v401, %v411
      %v414 = vmul.f32 %v410, %v412
      %v415 = vsub.f32 2.0, %v413
      %v416 = vsub.f32 2.0, %v414
      %v417 = vmul.f32 %v411, %v415
      %v418 = vmul.f32 %v412, %v416
      %v419 = vmul.f32 %v382, %v417
      %v420 = vmul.f32 %v384, %v418
      %v421 = vmul.f32 %v386, %v417
      %v422 = vmul.f32 %v388, %v418
      %v423 = vmul.f32 %v390, %v417
      %v424 = vmul.f32 %v392, %v418
      %v425 = vsel %vm355, %v354, 19
      %v426 = vlaneseq
      %v427 = vshrl.u32 %v426, 7
      %v428 = vadd.s32 %v427, 8
      %v429 = vadd.s32 %v427, 16
      %v430 = vperm.slane %v425, 0
      %v431 = vperm.slane %v425, 1
      %vm432 = vcmp.eq.s32.totalorder %v427, %v430
      %vm433 = vcmp.eq.s32.totalorder %v427, %v431
      %vm434 = vcmp.eq.s32.totalorder %v428, %v430
      %vm435 = vcmp.eq.s32.totalorder %v428, %v431
      %vm436 = vcmp.eq.s32.totalorder %v429, %v430
      %vm437 = vcmp.eq.s32.totalorder %v429, %v431
      %v438 = vsel %vm432, %v419, 0.0
      %v439 = vsel %vm433, %v420, 0.0
      %v440 = vsel %vm434, %v421, 0.0
      %v441 = vsel %vm435, %v422, 0.0
      %v442 = vsel %vm436, %v423, 0.0
      %v443 = vsel %vm437, %v424, 0.0
      %v444 = vadd.f32 %v438, %v439
      %v445 = vadd.f32 %v440, %v441
      %v446 = vadd.f32 %v442, %v443
      %v447 = vadd.f32 %v444, 0.0
      %v448 = vadd.f32 %v445, 0.0
      %v449 = vadd.f32 %v446, 0.0
      %v450 = vsel %vm355, 1, 0
      %v451 = vperm.slane %v450, 0
      %v452 = vperm.slane %v450, 1
      %vm453 = vcmp.eq.s32.totalorder %v451, 1
      %vm454 = vcmp.eq.s32.totalorder %v452, 1
      %v455 = vsel %vm453, %v419, 0.0
      %v456 = vsel %vm454, %v420, 0.0
      %v457 = vsel %vm453, %v421, 0.0
      %v458 = vsel %vm454, %v422, 0.0
      %v459 = vsel %vm453, %v423, 0.0
      %v460 = vsel %vm454, %v424, 0.0
      %v461 = vadd.f32 %v455, %v456
      %v462 = vadd.f32 %v457, %v458
      %v463 = vadd.f32 %v459, %v460
      %v464 = vadd.f32 %v461, 0.0
      %v465 = vadd.f32 %v462, 0.0
      %v466 = vadd.f32 %v463, 0.0
      %v467 = vsel %vm432, 1, 0
      %v468 = vsel %vm433, 1, 0
      %v469 = vsel %vm434, 1, 0
      %v470 = vsel %vm435, 1, 0
      %v471 = vsel %vm436, 1, 0
      %v472 = vsel %vm437, 1, 0
      %v473 = vcvt.s32.f32 %v467
      %v474 = vcvt.s32.f32 %v468
      %v475 = vcvt.s32.f32 %v469
      %v476 = vcvt.s32.f32 %v470
      %v477 = vcvt.s32.f32 %v471
      %v478 = vcvt.s32.f32 %v472
      %v479 = vadd.f32 %v473, %v474
      %v480 = vadd.f32 %v475, %v476
      %v481 = vadd.f32 %v477, %v478
      %v482 = vadd.f32 %v479, 0.0
      %v483 = vadd.f32 %v480, 0.0
      %v484 = vadd.f32 %v481, 0.0
      %v485 = vld [vmem:[%s316] sm:$0xff]
      %v486 = vld [vmem:[%s316 + $0x8] sm:$0xff]
      %v487 = vld [vmem:[%s316 + $0x10] sm:$0x7]
      %v488 = vadd.f32 %v485, %v447
      %v489 = vadd.f32 %v486, %v448
      %v490 = vadd.f32 %v487, %v449
      %491 = vst [vmem:[%s316] sm:$0xff] %v488
      %492 = vst [vmem:[%s316 + $0x8] sm:$0xff] %v489
      %493 = vst [vmem:[%s316 + $0x10] sm:$0x7] %v490
      %v494 = vld [vmem:[%s325] sm:$0xff]
      %v495 = vld [vmem:[%s325 + $0x8] sm:$0xff]
      %v496 = vld [vmem:[%s325 + $0x10] sm:$0x7]
      %v497 = vadd.f32 %v494, %v464
      %v498 = vadd.f32 %v495, %v465
      %v499 = vadd.f32 %v496, %v466
      %500 = vst [vmem:[%s325] sm:$0xff] %v497
      %501 = vst [vmem:[%s325 + $0x8] sm:$0xff] %v498
      %502 = vst [vmem:[%s325 + $0x10] sm:$0x7] %v499
      %v503 = vld [vmem:[%s334] sm:$0xff]
      %v504 = vld [vmem:[%s334 + $0x8] sm:$0xff]
      %v505 = vld [vmem:[%s334 + $0x10] sm:$0x7]
      %v506 = vadd.f32 %v503, %v482
      %v507 = vadd.f32 %v504, %v483
      %v508 = vadd.f32 %v505, %v484
      %509 = vst [vmem:[%s334] sm:$0xff] %v506
      %510 = vst [vmem:[%s334 + $0x8] sm:$0xff] %v507
      %511 = vst [vmem:[%s334 + $0x10] sm:$0x7] %v508
      %p512 = scmp.lt.s32.totalorder %s21, 1
      %s513 = scalar_select %p512, %s21, 1
      %p514 = scmp.lt.s32.totalorder %s22, 0
      %s515 = scalar_select %p514, %s22, 0
      %s516 = smul.addr %s515, 3
      %s517 = smul.addr %s513, 3
      %s518 = sadd.s32 %s516, %s517
      %s519 = smul.addr %s518, 8
      %s520 = scalar_lea.vmem %s2, %s519
      %p521 = scmp.lt.s32.totalorder %s21, 1
      %s522 = scalar_select %p521, %s21, 1
      %p523 = scmp.lt.s32.totalorder %s22, 0
      %s524 = scalar_select %p523, %s22, 0
      %s525 = smul.addr %s524, 3
      %s526 = smul.addr %s522, 3
      %s527 = sadd.s32 %s525, %s526
      %s528 = smul.addr %s527, 8
      %s529 = scalar_lea.vmem %s3, %s528
      %p530 = scmp.lt.s32.totalorder %s21, 1
      %s531 = scalar_select %p530, %s21, 1
      %p532 = scmp.lt.s32.totalorder %s22, 0
      %s533 = scalar_select %p532, %s22, 0
      %s534 = smul.addr %s533, 3
      %s535 = smul.addr %s531, 3
      %s536 = sadd.s32 %s534, %s535
      %s537 = smul.addr %s536, 8
      %s538 = scalar_lea.vmem %s4, %s537
      // Predicated region
      $region33: #{logcosh_dice_loss.1} parent=27 // pred_check
        %p539 = pneg %p115
      $region34: #{logcosh_dice_loss.1} parent=27 // pred_check_branch
        %541 = sbr.rel (%p539) target = $region36
      $region35: #{logcosh_dice_loss.1} parent=27 // pred_region
        _
      $region36: #{logcosh_dice_loss.1} parent=27 // pred_fallthru
        _
      // Predicated region
      $region37: #{logcosh_dice_loss.1} parent=27 // pred_check
        %p542 = pneg %p143
      $region38: #{logcosh_dice_loss.1} parent=27 // pred_check_branch
        %544 = sbr.rel (%p542) target = $region40
      $region39: #{logcosh_dice_loss.1} parent=27 // pred_region
        _
      $region40: #{logcosh_dice_loss.1} parent=27 // pred_fallthru
        _
      // Predicated region
      $region41: #{logcosh_dice_loss.1} parent=27 // pred_check
        %p545 = pneg %p171
      $region42: #{logcosh_dice_loss.1} parent=27 // pred_check_branch
        %547 = sbr.rel (%p545) target = $region44
      $region43: #{logcosh_dice_loss.1} parent=27 // pred_region
        _
      $region44: #{logcosh_dice_loss.1} parent=27 // pred_fallthru
        _
    $region28: #{logcosh_dice_loss.1} parent=5 // pred_fallthru
      _
    %p548 = scmp.le.s32.totalorder 2, %s11
    // Predicated region
    $region45: #{logcosh_dice_loss.1} parent=5 // pred_check
      %p549 = pneg %p548
    $region46: #{logcosh_dice_loss.1} parent=5 // pred_check_branch
      %551 = sbr.rel (%p549) target = $region48
    $region47: #{logcosh_dice_loss.1} parent=5 // pred_region
      %s552 = ssub.s32 %s11, 2
      // Predicated region
      $region49: #{logcosh_dice_loss.1} parent=47 // pred_check
        %p553 = pneg %p121
      $region50: #{logcosh_dice_loss.1} parent=47 // pred_check_branch
        %555 = sbr.rel (%p553) target = $region52
      $region51: #{logcosh_dice_loss.1} parent=47 // pred_region
        %p556 = scmp.lt.s32.totalorder %s24, 1
        %s557 = scalar_select %p556, %s24, 1
        %p558 = scmp.lt.s32.totalorder %s25, 0
        %s559 = scalar_select %p558, %s25, 0
        %s560 = smul.addr %s559, 3
        %s561 = smul.addr %s557, 3
        %s562 = sadd.s32 %s560, %s561
        %s563 = smul.addr %s562, 8
        %s564 = scalar_lea.vmem %s2, %s563
      $region52: #{logcosh_dice_loss.1} parent=47 // pred_fallthru
        _
      // Predicated region
      $region53: #{logcosh_dice_loss.1} parent=47 // pred_check
        %p565 = pneg %p149
      $region54: #{logcosh_dice_loss.1} parent=47 // pred_check_branch
        %567 = sbr.rel (%p565) target = $region56
      $region55: #{logcosh_dice_loss.1} parent=47 // pred_region
        %p568 = scmp.lt.s32.totalorder %s24, 1
        %s569 = scalar_select %p568, %s24, 1
        %p570 = scmp.lt.s32.totalorder %s25, 0
        %s571 = scalar_select %p570, %s25, 0
        %s572 = smul.addr %s571, 3
        %s573 = smul.addr %s569, 3
        %s574 = sadd.s32 %s572, %s573
        %s575 = smul.addr %s574, 8
        %s576 = scalar_lea.vmem %s3, %s575
      $region56: #{logcosh_dice_loss.1} parent=47 // pred_fallthru
        _
      // Predicated region
      $region57: #{logcosh_dice_loss.1} parent=47 // pred_check
        %p577 = pneg %p177
      $region58: #{logcosh_dice_loss.1} parent=47 // pred_check_branch
        %579 = sbr.rel (%p577) target = $region60
      $region59: #{logcosh_dice_loss.1} parent=47 // pred_region
        %p580 = scmp.lt.s32.totalorder %s24, 1
        %s581 = scalar_select %p580, %s24, 1
        %p582 = scmp.lt.s32.totalorder %s25, 0
        %s583 = scalar_select %p582, %s25, 0
        %s584 = smul.addr %s583, 3
        %s585 = smul.addr %s581, 3
        %s586 = sadd.s32 %s584, %s585
        %s587 = smul.addr %s586, 8
        %s588 = scalar_lea.vmem %s4, %s587
      $region60: #{logcosh_dice_loss.1} parent=47 // pred_fallthru
        _
    $region48: #{logcosh_dice_loss.1} parent=5 // pred_fallthru
      _
  $region6: #{logcosh_dice_loss.1} parent=0 // loop_footer
    %s15 = sadd.s32 1, %s11
  $region7: #{logcosh_dice_loss.1} parent=0 // loop_footer_branch
    %10 = sbr.rel target = $region3
  $region8: #{logcosh_dice_loss.1} parent=0 // loop_exit
    _

</llo_original>
